<compile_context>
chip_gen: v7x
topology: tpu7x:2x2x1
jax: 0.10.0
libtpu: 0.0.40
codegen_flags: <defaults>
</compile_context>

<pallas_src>
import jax
import jax.numpy as jnp
from jax.experimental import pallas as pl
from jax.experimental.pallas import tpu as pltpu


def _attention_gated_kernel(xt_ref, wvu_ref, bvu_ref, ww_ref, bw_ref, o_ref):
    # xt_ref  : (L, TN)  bf16   -- x^T tile
    # wvu_ref : (2D, L)  bf16   -- [Wv; Wu] (torch Linear weight layout, stacked)
    # bvu_ref : (2D, 1)  f32    -- [bv; bu]
    # ww_ref  : (K, D)   bf16   -- attention_weights weight
    # bw_ref  : (K,)     f32    -- attention_weights bias (SMEM)
    # o_ref   : (K, TN)  f32    -- A^T tile (lane-dense)
    D = ww_ref.shape[1]

    # Stage 1: fused V/U projection, standard MXU contraction -> (2D, TN) f32.
    h = jnp.dot(wvu_ref[...], xt_ref[...], preferred_element_type=jnp.float32)
    h = h + bvu_ref[...]

    # Gating in f32 (VPU/EUP); sublane slices at the D=128 boundary are free.
    gated = jnp.tanh(h[:D, :]) * jax.nn.sigmoid(h[D:, :])        # (D, TN) f32

    # Stage 2: thin projection, again a standard sublane contraction -> (K, TN),
    # which is already the transposed, lane-dense output.
    a_t = jnp.dot(ww_ref[...], gated.astype(jnp.bfloat16),
                  preferred_element_type=jnp.float32)            # (K, TN)

    k = o_ref.shape[0]
    if k == 1:
        bias = bw_ref[0]                                         # scalar splat
    else:
        bias = jnp.stack([bw_ref[i] for i in range(k)])[:, None]
    o_ref[...] = (a_t + bias).astype(o_ref.dtype)


def attention_gated_forward(x, params):
    """Pallas implementation of Attention_Gated.forward.

    x: (N, L) float32 -- bag of N instances with L features each.
    params: torch-layout parameters (wv/wu: (D, L), bv/bu: (D,), ww: (K, D),
            bw: (K,)).
    returns (K, N) float32  (== torch.transpose(A, 1, 0))
    """
    N, L = x.shape
    D = params["wv"].shape[0]
    K = params["ww"].shape[0]
    assert params["wv"].shape == (D, L)
    assert params["wu"].shape == (D, L)
    assert params["ww"].shape == (K, D)

    # Layout / dtype plumbing (cheap XLA ops, fused under jit):
    x_t = jnp.transpose(x).astype(jnp.bfloat16)                    # (L, N)
    wvu = jnp.concatenate([params["wv"], params["wu"]], axis=0)    # (2D, L)
    wvu = wvu.astype(jnp.bfloat16)
    bvu = jnp.concatenate([params["bv"], params["bu"]], axis=0)
    bvu = bvu.reshape(2 * D, 1).astype(jnp.float32)                # (2D, 1)
    ww = params["ww"].astype(jnp.bfloat16)                         # (K, D)
    bw = params["bw"].reshape(K).astype(jnp.float32)               # (K,)

    # N-axis tiling: single block at small N, 1024-wide blocks for big bags
    # (keeps VMEM bounded and lets v7x shard the grid across its 2 TCs).
    tn = 1024 if (N > 1024 and N % 1024 == 0) else N
    grid = (N // tn,)

    return pl.pallas_call(
        _attention_gated_kernel,
        out_shape=jax.ShapeDtypeStruct((K, N), jnp.float32),
        grid=grid,
        in_specs=[
            pl.BlockSpec((L, tn), lambda i: (0, i)),
            pl.BlockSpec((2 * D, L), lambda i: (0, 0)),
            pl.BlockSpec((2 * D, 1), lambda i: (0, 0)),
            pl.BlockSpec((K, D), lambda i: (0, 0)),
            pl.BlockSpec(memory_space=pltpu.MemorySpace.SMEM),
        ],
        out_specs=pl.BlockSpec((K, tn), lambda i: (0, i)),
        compiler_params=pltpu.CompilerParams(
            dimension_semantics=("parallel",)),
    )(x_t, wvu, bvu, ww, bw)


def _reference_forward(x, params):
    """Pure-JAX reference mirroring the PyTorch module (torch Linear layout)."""
    a_v = jnp.tanh(x @ params["wv"].T + params["bv"])
    a_u = jax.nn.sigmoid(x @ params["wu"].T + params["bu"])
    a = (a_v * a_u) @ params["ww"].T + params["bw"]                # (N, K)
    return a.T                                                     # (K, N)


def init_params(key, L, D, K):
    """Deterministic init with nn.Linear weight/bias shapes and bounds."""
    ks = jax.random.split(key, 6)
    lim_l = float(L) ** -0.5
    lim_d = float(D) ** -0.5
    wv = jax.random.uniform(ks[0], (D, L), jnp.float32, -lim_l, lim_l)
    bv = jax.random.uniform(ks[1], (D,), jnp.float32, -lim_l, lim_l)
    wu = jax.random.uniform(ks[2], (D, L), jnp.float32, -lim_l, lim_l)
    bu = jax.random.uniform(ks[3], (D,), jnp.float32, -lim_l, lim_l)
    ww = jax.random.uniform(ks[4], (K, D), jnp.float32, -lim_d, lim_d)
    bw = jax.random.uniform(ks[5], (K,), jnp.float32, -lim_d, lim_d)
    return {"wv": wv, "bv": bv, "wu": wu, "bu": bu, "ww": ww, "bw": bw}


if __name__ == "__main__":
    L, D, K = 512, 128, 1   # module defaults
    N = 256                 # bag size; multiple of 128 -> lane-dense output

    key = jax.random.PRNGKey(0)
    kx, kp = jax.random.split(key)

    x = jax.random.normal(kx, (N, L), jnp.float32)
    params = init_params(kp, L, D, K)

    fwd = jax.jit(attention_gated_forward)
    out = jax.block_until_ready(fwd(x, params))

    ref = _reference_forward(x, params)
    assert out.shape == (K, N)
    # bf16 MXU operands with f32 accumulation -> slightly relaxed tolerance.
    assert jnp.allclose(out, ref, atol=1e-2, rtol=1e-2), "mismatch vs reference"

    print("KERNEL_OK")
</pallas_src>

<mosaic_0001>
module attributes {stable_mosaic.version = 11 : i64} {
  func.func @_attention_gated_kernel(%arg0: i32, %arg1: memref<512x256xbf16, #tpu.memory_space<vmem>>, %arg2: memref<256x512xbf16, #tpu.memory_space<vmem>>, %arg3: memref<256x1xf32, #tpu.memory_space<vmem>>, %arg4: memref<1x128xbf16, #tpu.memory_space<vmem>>, %arg5: memref<1xf32, #tpu.memory_space<smem>>, %arg6: memref<1x256xf32, #tpu.memory_space<vmem>>) attributes {dimension_semantics = [#tpu.dimension_semantics<parallel>], iteration_bounds = array<i64: 1>, scalar_prefetch = 0 : i64, scratch_operands = 0 : i64, tpu.core_type = #tpu.core_type<tc>, window_params = [{transform_indices = @transform_0, window_bounds = array<i64: 512, 256>}, {pipeline_mode = #tpu.pipeline_mode<synchronous>, transform_indices = @transform_1, window_bounds = array<i64: 256, 512>}, {pipeline_mode = #tpu.pipeline_mode<synchronous>, transform_indices = @transform_2, window_bounds = array<i64: 256, 1>}, {pipeline_mode = #tpu.pipeline_mode<synchronous>, transform_indices = @transform_3, window_bounds = array<i64: 1, 128>}, {transform_indices = @transform_4, window_bounds = array<i64: 1>}, {transform_indices = @transform_5, window_bounds = array<i64: 1, 256>}]} {
    %c0 = arith.constant 0 : index
    %c0_0 = arith.constant 0 : index
    %0 = vector.load %arg2[%c0, %c0_0] : memref<256x512xbf16, #tpu.memory_space<vmem>>, vector<256x512xbf16>
    %c0_1 = arith.constant 0 : index
    %c0_2 = arith.constant 0 : index
    %1 = vector.load %arg1[%c0_1, %c0_2] : memref<512x256xbf16, #tpu.memory_space<vmem>>, vector<512x256xbf16>
    %cst = arith.constant dense<0.000000e+00> : vector<256x256xf32>
    %2 = tpu.matmul %0, %1, %cst {dimension_numbers = #tpu.dot_dimension_numbers<[1], [0], [0], [1], [0, 0, 1, 1], [], []>} : vector<256x512xbf16>, vector<512x256xbf16>, vector<256x256xf32> -> vector<256x256xf32>
    %c0_3 = arith.constant 0 : index
    %c0_4 = arith.constant 0 : index
    %3 = vector.load %arg3[%c0_3, %c0_4] : memref<256x1xf32, #tpu.memory_space<vmem>>, vector<256x1xf32>
    %4 = vector.broadcast %3 : vector<256x1xf32> to vector<256x256xf32>
    %5 = arith.addf %2, %4 : vector<256x256xf32>
    %6 = vector.extract_strided_slice %5 {offsets = [0, 0], sizes = [128, 256], strides = [1, 1]} : vector<256x256xf32> to vector<128x256xf32>
    %7 = math.tanh %6 : vector<128x256xf32>
    %8 = vector.extract_strided_slice %5 {offsets = [128, 0], sizes = [128, 256], strides = [1, 1]} : vector<256x256xf32> to vector<128x256xf32>
    %9 = arith.negf %8 : vector<128x256xf32>
    %10 = math.exp %9 : vector<128x256xf32>
    %cst_5 = arith.constant 1.000000e+00 : f32
    %11 = vector.broadcast %cst_5 : f32 to vector<128x256xf32>
    %12 = arith.addf %11, %10 : vector<128x256xf32>
    %13 = arith.divf %11, %12 : vector<128x256xf32>
    %14 = arith.mulf %7, %13 : vector<128x256xf32>
    %c0_6 = arith.constant 0 : index
    %c0_7 = arith.constant 0 : index
    %15 = vector.load %arg4[%c0_6, %c0_7] : memref<1x128xbf16, #tpu.memory_space<vmem>>, vector<1x128xbf16>
    %16 = arith.truncf %14 : vector<128x256xf32> to vector<128x256xbf16>
    %cst_8 = arith.constant dense<0.000000e+00> : vector<1x256xf32>
    %17 = tpu.matmul %15, %16, %cst_8 {dimension_numbers = #tpu.dot_dimension_numbers<[1], [0], [0], [1], [0, 0, 1, 1], [], []>} : vector<1x128xbf16>, vector<128x256xbf16>, vector<1x256xf32> -> vector<1x256xf32>
    %c0_9 = arith.constant 0 : index
    %18 = memref.load %arg5[%c0_9] : memref<1xf32, #tpu.memory_space<smem>>
    %19 = vector.broadcast %18 : f32 to vector<1x256xf32>
    %20 = arith.addf %17, %19 : vector<1x256xf32>
    %c0_10 = arith.constant 0 : index
    %c0_11 = arith.constant 0 : index
    %21 = vector.load %arg6[%c0_10, %c0_11] : memref<1x256xf32, #tpu.memory_space<vmem>>, vector<1x256xf32>
    tpu.vector_store %arg6[%c0_10, %c0_11], %20 {strides = array<i32>} : memref<1x256xf32, #tpu.memory_space<vmem>>, vector<1x256xf32>,
    return
  }
  func.func @transform_0(%arg0: i32) -> (i32, i32) {
    %c0_i32 = arith.constant 0 : i32
    %c0_i32_0 = arith.constant 0 : i32
    return %c0_i32, %arg0 : i32, i32
  }
  func.func @transform_1(%arg0: i32) -> (i32, i32) {
    %c0_i32 = arith.constant 0 : i32
    %c0_i32_0 = arith.constant 0 : i32
    %c0_i32_1 = arith.constant 0 : i32
    return %c0_i32, %c0_i32_0 : i32, i32
  }
  func.func @transform_2(%arg0: i32) -> (i32, i32) {
    %c0_i32 = arith.constant 0 : i32
    %c0_i32_0 = arith.constant 0 : i32
    %c0_i32_1 = arith.constant 0 : i32
    return %c0_i32, %c0_i32_0 : i32, i32
  }
  func.func @transform_3(%arg0: i32) -> (i32, i32) {
    %c0_i32 = arith.constant 0 : i32
    %c0_i32_0 = arith.constant 0 : i32
    %c0_i32_1 = arith.constant 0 : i32
    return %c0_i32, %c0_i32_0 : i32, i32
  }
  func.func @transform_4(%arg0: i32) -> i32 {
    %c0_i32 = arith.constant 0 : i32
    %c0_i32_0 = arith.constant 0 : i32
    return %c0_i32 : i32
  }
  func.func @transform_5(%arg0: i32) -> (i32, i32) {
    %c0_i32 = arith.constant 0 : i32
    %c0_i32_0 = arith.constant 0 : i32
    return %c0_i32, %arg0 : i32, i32
  }
}

</mosaic_0001>

<llo_original>
// kernel: attention_gated_forward.1
$region0: #{attention_gated_forward.1}
  #allocation0 [shape = 'u32[]', space=smem, size = 0x4, offset = 0x4, fixed_abs, tag = 'smem constant byte address 0x4 - core index']
  #allocation1 [shape = 'u32[144,128]{1,0:T(1,128)}', space=vmem, size = 0x12000, scoped, tag = 'internal scratch']
  #allocation2 [shape = 'f32[1]{0:T(128)S(6)}', space=smem, size = 0x200, scoped, tag = 'scoped memory for attention_gated_forward.1']
  %s0 = inlined_call_operand.vmem [shape: bf16[512,256], index: 0, kind: input, shape index: {}]
  %s1 = inlined_call_operand.vmem [shape: bf16[256,512], index: 1, kind: input, shape index: {}]
  %s2 = inlined_call_operand.vmem [shape: f32[256,1], index: 2, kind: input, shape index: {}]
  %s3 = inlined_call_operand.vmem [shape: bf16[1,128], index: 3, kind: input, shape index: {}]
  %s4 = inlined_call_operand.<no memory space> [shape: f32[1], index: 4, kind: input, shape index: {}]
  %s5 = inlined_call_operand.hbm [shape: f32[1,256], index: 5, kind: output, shape index: {}]
  %s6 = sld [smem:[#allocation0]]
  $region30: #{attention_gated_forward.1} parent=0
    _
  %s8 = ssub.s32 1, %s6
  %s9 = scalar_select 0, %s8, %s6
  %10 = sst [smem:[#allocation2]] %s4
  $region1: #{attention_gated_forward.1} parent=0
    #allocation3 [shape = 'u8[1024]{0}', space=vmem, size = 0x400, scoped, tag = 'output window, operand 0, single buffered']
    #allocation4 [shape = 's32[1]{0}', space=sflag, size = 0x4, scoped, tag = 'scoped memory for attention_gated_forward.1']
    %11 = vsyncpa [#allocation4], 0
    // Predicated region
    $region2: #{attention_gated_forward.1} parent=1 // pred_check
      _
    $region3: #{attention_gated_forward.1} parent=1 // pred_check_branch
      %13 = sbr.rel (0) target = $region5
    $region4: #{attention_gated_forward.1} parent=1 // pred_region
      _
    $region5: #{attention_gated_forward.1} parent=1 // pred_fallthru
      _
    // Predicated region
    $region6: #{attention_gated_forward.1} parent=1 // pred_check
      _
    $region7: #{attention_gated_forward.1} parent=1 // pred_check_branch
      %15 = sbr.rel (0) target = $region9
    $region8: #{attention_gated_forward.1} parent=1 // pred_region
      _
    $region9: #{attention_gated_forward.1} parent=1 // pred_fallthru
      _
    // Predicated region
    $region10: #{attention_gated_forward.1} parent=1 // pred_check
      _
    $region11: #{attention_gated_forward.1} parent=1 // pred_check_branch
      %17 = sbr.rel (0) target = $region13
    $region12: #{attention_gated_forward.1} parent=1 // pred_region
      _
    $region13: #{attention_gated_forward.1} parent=1 // pred_fallthru
      _
    // Predicated region
    $region14: #{attention_gated_forward.1} parent=1 // pred_check
      _
    $region15: #{attention_gated_forward.1} parent=1 // pred_check_branch
      %19 = sbr.rel (0) target = $region17
    $region16: #{attention_gated_forward.1} parent=1 // pred_region
      _
    $region17: #{attention_gated_forward.1} parent=1 // pred_fallthru
      _
    // Predicated region
    $region18: #{attention_gated_forward.1} parent=1 // pred_check
      _
    $region19: #{attention_gated_forward.1} parent=1 // pred_check_branch
      %21 = sbr.rel (0) target = $region21
    $region20: #{attention_gated_forward.1} parent=1 // pred_region
      _
    $region21: #{attention_gated_forward.1} parent=1 // pred_fallthru
      _
    %v23 = vld [vmem:[%s1] sm:$0xff]
    %v24 = vld [vmem:[%s1 + $0x8] sm:$0xff]
    %v25 = vld [vmem:[%s1 + $0x10] sm:$0xff]
    %v26 = vld [vmem:[%s1 + $0x18] sm:$0xff]
    %v27 = vld [vmem:[%s1 + $0x20] sm:$0xff]
    %v28 = vld [vmem:[%s1 + $0x28] sm:$0xff]
    %v29 = vld [vmem:[%s1 + $0x30] sm:$0xff]
    %v30 = vld [vmem:[%s1 + $0x38] sm:$0xff]
    %v31 = vld [vmem:[%s1 + $0x40] sm:$0xff]
    %v32 = vld [vmem:[%s1 + $0x48] sm:$0xff]
    %v33 = vld [vmem:[%s1 + $0x50] sm:$0xff]
    %v34 = vld [vmem:[%s1 + $0x58] sm:$0xff]
    %v35 = vld [vmem:[%s1 + $0x60] sm:$0xff]
    %v36 = vld [vmem:[%s1 + $0x68] sm:$0xff]
    %v37 = vld [vmem:[%s1 + $0x70] sm:$0xff]
    %v38 = vld [vmem:[%s1 + $0x78] sm:$0xff]
    %v39 = vld [vmem:[%s1 + $0x80] sm:$0xff]
    %v40 = vld [vmem:[%s1 + $0x88] sm:$0xff]
    %v41 = vld [vmem:[%s1 + $0x90] sm:$0xff]
    %v42 = vld [vmem:[%s1 + $0x98] sm:$0xff]
    %v43 = vld [vmem:[%s1 + $0xa0] sm:$0xff]
    %v44 = vld [vmem:[%s1 + $0xa8] sm:$0xff]
    %v45 = vld [vmem:[%s1 + $0xb0] sm:$0xff]
    %v46 = vld [vmem:[%s1 + $0xb8] sm:$0xff]
    %v47 = vld [vmem:[%s1 + $0xc0] sm:$0xff]
    %v48 = vld [vmem:[%s1 + $0xc8] sm:$0xff]
    %v49 = vld [vmem:[%s1 + $0xd0] sm:$0xff]
    %v50 = vld [vmem:[%s1 + $0xd8] sm:$0xff]
    %v51 = vld [vmem:[%s1 + $0xe0] sm:$0xff]
    %v52 = vld [vmem:[%s1 + $0xe8] sm:$0xff]
    %v53 = vld [vmem:[%s1 + $0xf0] sm:$0xff]
    %v54 = vld [vmem:[%s1 + $0xf8] sm:$0xff]
    %v55 = vld [vmem:[%s1 + $0x100] sm:$0xff]
    %v56 = vld [vmem:[%s1 + $0x108] sm:$0xff]
    %v57 = vld [vmem:[%s1 + $0x110] sm:$0xff]
    %v58 = vld [vmem:[%s1 + $0x118] sm:$0xff]
    %v59 = vld [vmem:[%s1 + $0x120] sm:$0xff]
    %v60 = vld [vmem:[%s1 + $0x128] sm:$0xff]
    %v61 = vld [vmem:[%s1 + $0x130] sm:$0xff]
    %v62 = vld [vmem:[%s1 + $0x138] sm:$0xff]
    %v63 = vld [vmem:[%s1 + $0x140] sm:$0xff]
    %v64 = vld [vmem:[%s1 + $0x148] sm:$0xff]
    %v65 = vld [vmem:[%s1 + $0x150] sm:$0xff]
    %v66 = vld [vmem:[%s1 + $0x158] sm:$0xff]
    %v67 = vld [vmem:[%s1 + $0x160] sm:$0xff]
    %v68 = vld [vmem:[%s1 + $0x168] sm:$0xff]
    %v69 = vld [vmem:[%s1 + $0x170] sm:$0xff]
    %v70 = vld [vmem:[%s1 + $0x178] sm:$0xff]
    %v71 = vld [vmem:[%s1 + $0x180] sm:$0xff]
    %v72 = vld [vmem:[%s1 + $0x188] sm:$0xff]
    %v73 = vld [vmem:[%s1 + $0x190] sm:$0xff]
    %v74 = vld [vmem:[%s1 + $0x198] sm:$0xff]
    %v75 = vld [vmem:[%s1 + $0x1a0] sm:$0xff]
    %v76 = vld [vmem:[%s1 + $0x1a8] sm:$0xff]
    %v77 = vld [vmem:[%s1 + $0x1b0] sm:$0xff]
    %v78 = vld [vmem:[%s1 + $0x1b8] sm:$0xff]
    %v79 = vld [vmem:[%s1 + $0x1c0] sm:$0xff]
    %v80 = vld [vmem:[%s1 + $0x1c8] sm:$0xff]
    %v81 = vld [vmem:[%s1 + $0x1d0] sm:$0xff]
    %v82 = vld [vmem:[%s1 + $0x1d8] sm:$0xff]
    %v83 = vld [vmem:[%s1 + $0x1e0] sm:$0xff]
    %v84 = vld [vmem:[%s1 + $0x1e8] sm:$0xff]
    %v85 = vld [vmem:[%s1 + $0x1f0] sm:$0xff]
    %v86 = vld [vmem:[%s1 + $0x1f8] sm:$0xff]
    %v87 = vld [vmem:[%s0] sm:$0xff]
    %v88 = vld [vmem:[%s0 + $0x8] sm:$0xff]
    %v89 = vld [vmem:[%s0 + $0x10] sm:$0xff]
    %v90 = vld [vmem:[%s0 + $0x18] sm:$0xff]
    %v91 = vld [vmem:[%s0 + $0x20] sm:$0xff]
    %v92 = vld [vmem:[%s0 + $0x28] sm:$0xff]
    %v93 = vld [vmem:[%s0 + $0x30] sm:$0xff]
    %v94 = vld [vmem:[%s0 + $0x38] sm:$0xff]
    %v95 = vld [vmem:[%s0 + $0x40] sm:$0xff]
    %v96 = vld [vmem:[%s0 + $0x48] sm:$0xff]
    %v97 = vld [vmem:[%s0 + $0x50] sm:$0xff]
    %v98 = vld [vmem:[%s0 + $0x58] sm:$0xff]
    %v99 = vld [vmem:[%s0 + $0x60] sm:$0xff]
    %v100 = vld [vmem:[%s0 + $0x68] sm:$0xff]
    %v101 = vld [vmem:[%s0 + $0x70] sm:$0xff]
    %v102 = vld [vmem:[%s0 + $0x78] sm:$0xff]
    %v103 = vld [vmem:[%s0 + $0x80] sm:$0xff]
    %v104 = vld [vmem:[%s0 + $0x88] sm:$0xff]
    %v105 = vld [vmem:[%s0 + $0x90] sm:$0xff]
    %v106 = vld [vmem:[%s0 + $0x98] sm:$0xff]
    %v107 = vld [vmem:[%s0 + $0xa0] sm:$0xff]
    %v108 = vld [vmem:[%s0 + $0xa8] sm:$0xff]
    %v109 = vld [vmem:[%s0 + $0xb0] sm:$0xff]
    %v110 = vld [vmem:[%s0 + $0xb8] sm:$0xff]
    %v111 = vld [vmem:[%s0 + $0xc0] sm:$0xff]
    %v112 = vld [vmem:[%s0 + $0xc8] sm:$0xff]
    %v113 = vld [vmem:[%s0 + $0xd0] sm:$0xff]
    %v114 = vld [vmem:[%s0 + $0xd8] sm:$0xff]
    %v115 = vld [vmem:[%s0 + $0xe0] sm:$0xff]
    %v116 = vld [vmem:[%s0 + $0xe8] sm:$0xff]
    %v117 = vld [vmem:[%s0 + $0xf0] sm:$0xff]
    %v118 = vld [vmem:[%s0 + $0xf8] sm:$0xff]
    %v119 = vld [vmem:[%s0 + $0x100] sm:$0xff]
    %v120 = vld [vmem:[%s0 + $0x108] sm:$0xff]
    %v121 = vld [vmem:[%s0 + $0x110] sm:$0xff]
    %v122 = vld [vmem:[%s0 + $0x118] sm:$0xff]
    %v123 = vld [vmem:[%s0 + $0x120] sm:$0xff]
    %v124 = vld [vmem:[%s0 + $0x128] sm:$0xff]
    %v125 = vld [vmem:[%s0 + $0x130] sm:$0xff]
    %v126 = vld [vmem:[%s0 + $0x138] sm:$0xff]
    %v127 = vld [vmem:[%s0 + $0x140] sm:$0xff]
    %v128 = vld [vmem:[%s0 + $0x148] sm:$0xff]
    %v129 = vld [vmem:[%s0 + $0x150] sm:$0xff]
    %v130 = vld [vmem:[%s0 + $0x158] sm:$0xff]
    %v131 = vld [vmem:[%s0 + $0x160] sm:$0xff]
    %v132 = vld [vmem:[%s0 + $0x168] sm:$0xff]
    %v133 = vld [vmem:[%s0 + $0x170] sm:$0xff]
    %v134 = vld [vmem:[%s0 + $0x178] sm:$0xff]
    %v135 = vld [vmem:[%s0 + $0x180] sm:$0xff]
    %v136 = vld [vmem:[%s0 + $0x188] sm:$0xff]
    %v137 = vld [vmem:[%s0 + $0x190] sm:$0xff]
    %v138 = vld [vmem:[%s0 + $0x198] sm:$0xff]
    %v139 = vld [vmem:[%s0 + $0x1a0] sm:$0xff]
    %v140 = vld [vmem:[%s0 + $0x1a8] sm:$0xff]
    %v141 = vld [vmem:[%s0 + $0x1b0] sm:$0xff]
    %v142 = vld [vmem:[%s0 + $0x1b8] sm:$0xff]
    %v143 = vld [vmem:[%s0 + $0x1c0] sm:$0xff]
    %v144 = vld [vmem:[%s0 + $0x1c8] sm:$0xff]
    %v145 = vld [vmem:[%s0 + $0x1d0] sm:$0xff]
    %v146 = vld [vmem:[%s0 + $0x1d8] sm:$0xff]
    %v147 = vld [vmem:[%s0 + $0x1e0] sm:$0xff]
    %v148 = vld [vmem:[%s0 + $0x1e8] sm:$0xff]
    %v149 = vld [vmem:[%s0 + $0x1f0] sm:$0xff]
    %v150 = vld [vmem:[%s0 + $0x1f8] sm:$0xff]
    %v151 = vld [vmem:[%s2] sm:$0xff]
    %v152 = vld [vmem:[%s2 + $0x8] sm:$0xff]
    %v153 = vld [vmem:[%s2 + $0x10] sm:$0xff]
    %v154 = vld [vmem:[%s2 + $0x18] sm:$0xff]
    %v155 = vld [vmem:[%s2 + $0x20] sm:$0xff]
    %v156 = vld [vmem:[%s2 + $0x28] sm:$0xff]
    %v157 = vld [vmem:[%s2 + $0x30] sm:$0xff]
    %v158 = vld [vmem:[%s2 + $0x38] sm:$0xff]
    %v159 = vld [vmem:[%s2 + $0x40] sm:$0xff]
    %v160 = vld [vmem:[%s2 + $0x48] sm:$0xff]
    %v161 = vld [vmem:[%s2 + $0x50] sm:$0xff]
    %v162 = vld [vmem:[%s2 + $0x58] sm:$0xff]
    %v163 = vld [vmem:[%s2 + $0x60] sm:$0xff]
    %v164 = vld [vmem:[%s2 + $0x68] sm:$0xff]
    %v165 = vld [vmem:[%s2 + $0x70] sm:$0xff]
    %v166 = vld [vmem:[%s2 + $0x78] sm:$0xff]
    %v167 = vld [vmem:[%s2 + $0x80] sm:$0xff]
    %v168 = vld [vmem:[%s2 + $0x88] sm:$0xff]
    %v169 = vld [vmem:[%s2 + $0x90] sm:$0xff]
    %v170 = vld [vmem:[%s2 + $0x98] sm:$0xff]
    %v171 = vld [vmem:[%s2 + $0xa0] sm:$0xff]
    %v172 = vld [vmem:[%s2 + $0xa8] sm:$0xff]
    %v173 = vld [vmem:[%s2 + $0xb0] sm:$0xff]
    %v174 = vld [vmem:[%s2 + $0xb8] sm:$0xff]
    %v175 = vld [vmem:[%s2 + $0xc0] sm:$0xff]
    %v176 = vld [vmem:[%s2 + $0xc8] sm:$0xff]
    %v177 = vld [vmem:[%s2 + $0xd0] sm:$0xff]
    %v178 = vld [vmem:[%s2 + $0xd8] sm:$0xff]
    %v179 = vld [vmem:[%s2 + $0xe0] sm:$0xff]
    %v180 = vld [vmem:[%s2 + $0xe8] sm:$0xff]
    %v181 = vld [vmem:[%s2 + $0xf0] sm:$0xff]
    %v182 = vld [vmem:[%s2 + $0xf8] sm:$0xff]
    %184 = vset.pattern.permute.xlu0 0
    %185 = vperm.xlu0 %184, %v151
    %v186 = vpop.permute.xlu0 %185
    %189 = vset.pattern.permute.xlu0 0
    %190 = vperm.xlu0 %189, %v152
    %v191 = vpop.permute.xlu0 %190
    %194 = vset.pattern.permute.xlu0 0
    %195 = vperm.xlu0 %194, %v153
    %v196 = vpop.permute.xlu0 %195
    %199 = vset.pattern.permute.xlu0 0
    %200 = vperm.xlu0 %199, %v154
    %v201 = vpop.permute.xlu0 %200
    %204 = vset.pattern.permute.xlu0 0
    %205 = vperm.xlu0 %204, %v155
    %v206 = vpop.permute.xlu0 %205
    %209 = vset.pattern.permute.xlu0 0
    %210 = vperm.xlu0 %209, %v156
    %v211 = vpop.permute.xlu0 %210
    %214 = vset.pattern.permute.xlu0 0
    %215 = vperm.xlu0 %214, %v157
    %v216 = vpop.permute.xlu0 %215
    %219 = vset.pattern.permute.xlu0 0
    %220 = vperm.xlu0 %219, %v158
    %v221 = vpop.permute.xlu0 %220
    %224 = vset.pattern.permute.xlu0 0
    %225 = vperm.xlu0 %224, %v159
    %v226 = vpop.permute.xlu0 %225
    %229 = vset.pattern.permute.xlu0 0
    %230 = vperm.xlu0 %229, %v160
    %v231 = vpop.permute.xlu0 %230
    %234 = vset.pattern.permute.xlu0 0
    %235 = vperm.xlu0 %234, %v161
    %v236 = vpop.permute.xlu0 %235
    %239 = vset.pattern.permute.xlu0 0
    %240 = vperm.xlu0 %239, %v162
    %v241 = vpop.permute.xlu0 %240
    %244 = vset.pattern.permute.xlu0 0
    %245 = vperm.xlu0 %244, %v163
    %v246 = vpop.permute.xlu0 %245
    %249 = vset.pattern.permute.xlu0 0
    %250 = vperm.xlu0 %249, %v164
    %v251 = vpop.permute.xlu0 %250
    %254 = vset.pattern.permute.xlu0 0
    %255 = vperm.xlu0 %254, %v165
    %v256 = vpop.permute.xlu0 %255
    %259 = vset.pattern.permute.xlu0 0
    %260 = vperm.xlu0 %259, %v166
    %v261 = vpop.permute.xlu0 %260
    %264 = vset.pattern.permute.xlu0 0
    %265 = vperm.xlu0 %264, %v167
    %v266 = vpop.permute.xlu0 %265
    %269 = vset.pattern.permute.xlu0 0
    %270 = vperm.xlu0 %269, %v168
    %v271 = vpop.permute.xlu0 %270
    %274 = vset.pattern.permute.xlu0 0
    %275 = vperm.xlu0 %274, %v169
    %v276 = vpop.permute.xlu0 %275
    %279 = vset.pattern.permute.xlu0 0
    %280 = vperm.xlu0 %279, %v170
    %v281 = vpop.permute.xlu0 %280
    %284 = vset.pattern.permute.xlu0 0
    %285 = vperm.xlu0 %284, %v171
    %v286 = vpop.permute.xlu0 %285
    %289 = vset.pattern.permute.xlu0 0
    %290 = vperm.xlu0 %289, %v172
    %v291 = vpop.permute.xlu0 %290
    %294 = vset.pattern.permute.xlu0 0
    %295 = vperm.xlu0 %294, %v173
    %v296 = vpop.permute.xlu0 %295
    %299 = vset.pattern.permute.xlu0 0
    %300 = vperm.xlu0 %299, %v174
    %v301 = vpop.permute.xlu0 %300
    %304 = vset.pattern.permute.xlu0 0
    %305 = vperm.xlu0 %304, %v175
    %v306 = vpop.permute.xlu0 %305
    %309 = vset.pattern.permute.xlu0 0
    %310 = vperm.xlu0 %309, %v176
    %v311 = vpop.permute.xlu0 %310
    %314 = vset.pattern.permute.xlu0 0
    %315 = vperm.xlu0 %314, %v177
    %v316 = vpop.permute.xlu0 %315
    %319 = vset.pattern.permute.xlu0 0
    %320 = vperm.xlu0 %319, %v178
    %v321 = vpop.permute.xlu0 %320
    %324 = vset.pattern.permute.xlu0 0
    %325 = vperm.xlu0 %324, %v179
    %v326 = vpop.permute.xlu0 %325
    %329 = vset.pattern.permute.xlu0 0
    %330 = vperm.xlu0 %329, %v180
    %v331 = vpop.permute.xlu0 %330
    %334 = vset.pattern.permute.xlu0 0
    %335 = vperm.xlu0 %334, %v181
    %v336 = vpop.permute.xlu0 %335
    %339 = vset.pattern.permute.xlu0 0
    %340 = vperm.xlu0 %339, %v182
    %v341 = vpop.permute.xlu0 %340
    %v407 = vunpack.c.l.b16 %v23
    %v408 = vunpack.c.h.b16 %v23
    %v409 = vunpack.c.l.b16 %v24
    %v410 = vunpack.c.h.b16 %v24
    %v411 = vunpack.c.l.b16 %v25
    %v412 = vunpack.c.h.b16 %v25
    %v413 = vunpack.c.l.b16 %v26
    %v414 = vunpack.c.h.b16 %v26
    %v415 = vunpack.c.l.b16 %v27
    %v416 = vunpack.c.h.b16 %v27
    %v417 = vunpack.c.l.b16 %v28
    %v418 = vunpack.c.h.b16 %v28
    %v419 = vunpack.c.l.b16 %v29
    %v420 = vunpack.c.h.b16 %v29
    %v421 = vunpack.c.l.b16 %v30
    %v422 = vunpack.c.h.b16 %v30
    %v423 = vunpack.c.l.b16 %v31
    %v424 = vunpack.c.h.b16 %v31
    %v425 = vunpack.c.l.b16 %v32
    %v426 = vunpack.c.h.b16 %v32
    %v427 = vunpack.c.l.b16 %v33
    %v428 = vunpack.c.h.b16 %v33
    %v429 = vunpack.c.l.b16 %v34
    %v430 = vunpack.c.h.b16 %v34
    %v431 = vunpack.c.l.b16 %v35
    %v432 = vunpack.c.h.b16 %v35
    %v433 = vunpack.c.l.b16 %v36
    %v434 = vunpack.c.h.b16 %v36
    %v435 = vunpack.c.l.b16 %v37
    %v436 = vunpack.c.h.b16 %v37
    %v437 = vunpack.c.l.b16 %v38
    %v438 = vunpack.c.h.b16 %v38
    %v439 = vunpack.c.l.b16 %v39
    %v440 = vunpack.c.h.b16 %v39
    %v441 = vunpack.c.l.b16 %v40
    %v442 = vunpack.c.h.b16 %v40
    %v443 = vunpack.c.l.b16 %v41
    %v444 = vunpack.c.h.b16 %v41
    %v445 = vunpack.c.l.b16 %v42
    %v446 = vunpack.c.h.b16 %v42
    %v447 = vunpack.c.l.b16 %v43
    %v448 = vunpack.c.h.b16 %v43
    %v449 = vunpack.c.l.b16 %v44
    %v450 = vunpack.c.h.b16 %v44
    %v451 = vunpack.c.l.b16 %v45
    %v452 = vunpack.c.h.b16 %v45
    %v453 = vunpack.c.l.b16 %v46
    %v454 = vunpack.c.h.b16 %v46
    %v455 = vunpack.c.l.b16 %v47
    %v456 = vunpack.c.h.b16 %v47
    %v457 = vunpack.c.l.b16 %v48
    %v458 = vunpack.c.h.b16 %v48
    %v459 = vunpack.c.l.b16 %v49
    %v460 = vunpack.c.h.b16 %v49
    %v461 = vunpack.c.l.b16 %v50
    %v462 = vunpack.c.h.b16 %v50
    %v463 = vunpack.c.l.b16 %v51
    %v464 = vunpack.c.h.b16 %v51
    %v465 = vunpack.c.l.b16 %v52
    %v466 = vunpack.c.h.b16 %v52
    %v467 = vunpack.c.l.b16 %v53
    %v468 = vunpack.c.h.b16 %v53
    %v469 = vunpack.c.l.b16 %v54
    %v470 = vunpack.c.h.b16 %v54
    %v471 = vunpack.c.l.b16 %v55
    %v472 = vunpack.c.h.b16 %v55
    %v473 = vunpack.c.l.b16 %v56
    %v474 = vunpack.c.h.b16 %v56
    %v475 = vunpack.c.l.b16 %v57
    %v476 = vunpack.c.h.b16 %v57
    %v477 = vunpack.c.l.b16 %v58
    %v478 = vunpack.c.h.b16 %v58
    %v479 = vunpack.c.l.b16 %v59
    %v480 = vunpack.c.h.b16 %v59
    %v481 = vunpack.c.l.b16 %v60
    %v482 = vunpack.c.h.b16 %v60
    %v483 = vunpack.c.l.b16 %v61
    %v484 = vunpack.c.h.b16 %v61
    %v485 = vunpack.c.l.b16 %v62
    %v486 = vunpack.c.h.b16 %v62
    %v487 = vunpack.c.l.b16 %v63
    %v488 = vunpack.c.h.b16 %v63
    %v489 = vunpack.c.l.b16 %v64
    %v490 = vunpack.c.h.b16 %v64
    %v491 = vunpack.c.l.b16 %v65
    %v492 = vunpack.c.h.b16 %v65
    %v493 = vunpack.c.l.b16 %v66
    %v494 = vunpack.c.h.b16 %v66
    %v495 = vunpack.c.l.b16 %v67
    %v496 = vunpack.c.h.b16 %v67
    %v497 = vunpack.c.l.b16 %v68
    %v498 = vunpack.c.h.b16 %v68
    %v499 = vunpack.c.l.b16 %v69
    %v500 = vunpack.c.h.b16 %v69
    %v501 = vunpack.c.l.b16 %v70
    %v502 = vunpack.c.h.b16 %v70
    %v503 = vunpack.c.l.b16 %v71
    %v504 = vunpack.c.h.b16 %v71
    %v505 = vunpack.c.l.b16 %v72
    %v506 = vunpack.c.h.b16 %v72
    %v507 = vunpack.c.l.b16 %v73
    %v508 = vunpack.c.h.b16 %v73
    %v509 = vunpack.c.l.b16 %v74
    %v510 = vunpack.c.h.b16 %v74
    %v511 = vunpack.c.l.b16 %v75
    %v512 = vunpack.c.h.b16 %v75
    %v513 = vunpack.c.l.b16 %v76
    %v514 = vunpack.c.h.b16 %v76
    %v515 = vunpack.c.l.b16 %v77
    %v516 = vunpack.c.h.b16 %v77
    %v517 = vunpack.c.l.b16 %v78
    %v518 = vunpack.c.h.b16 %v78
    %v519 = vunpack.c.l.b16 %v79
    %v520 = vunpack.c.h.b16 %v79
    %v521 = vunpack.c.l.b16 %v80
    %v522 = vunpack.c.h.b16 %v80
    %v523 = vunpack.c.l.b16 %v81
    %v524 = vunpack.c.h.b16 %v81
    %v525 = vunpack.c.l.b16 %v82
    %v526 = vunpack.c.h.b16 %v82
    %v527 = vunpack.c.l.b16 %v83
    %v528 = vunpack.c.h.b16 %v83
    %v529 = vunpack.c.l.b16 %v84
    %v530 = vunpack.c.h.b16 %v84
    %v531 = vunpack.c.l.b16 %v85
    %v532 = vunpack.c.h.b16 %v85
    %v533 = vunpack.c.l.b16 %v86
    %v534 = vunpack.c.h.b16 %v86
    %v535 = vpack.c.b16 %v411, %v407
    %v536 = vpack.c.b16 %v412, %v408
    %v537 = vpack.c.b16 %v413, %v409
    %v538 = vpack.c.b16 %v414, %v410
    %v539 = vpack.c.b16 %v419, %v415
    %v540 = vpack.c.b16 %v420, %v416
    %v541 = vpack.c.b16 %v421, %v417
    %v542 = vpack.c.b16 %v422, %v418
    %v543 = vpack.c.b16 %v427, %v423
    %v544 = vpack.c.b16 %v428, %v424
    %v545 = vpack.c.b16 %v429, %v425
    %v546 = vpack.c.b16 %v430, %v426
    %v547 = vpack.c.b16 %v435, %v431
    %v548 = vpack.c.b16 %v436, %v432
    %v549 = vpack.c.b16 %v437, %v433
    %v550 = vpack.c.b16 %v438, %v434
    %v551 = vpack.c.b16 %v443, %v439
    %v552 = vpack.c.b16 %v444, %v440
    %v553 = vpack.c.b16 %v445, %v441
    %v554 = vpack.c.b16 %v446, %v442
    %v555 = vpack.c.b16 %v451, %v447
    %v556 = vpack.c.b16 %v452, %v448
    %v557 = vpack.c.b16 %v453, %v449
    %v558 = vpack.c.b16 %v454, %v450
    %v559 = vpack.c.b16 %v459, %v455
    %v560 = vpack.c.b16 %v460, %v456
    %v561 = vpack.c.b16 %v461, %v457
    %v562 = vpack.c.b16 %v462, %v458
    %v563 = vpack.c.b16 %v467, %v463
    %v564 = vpack.c.b16 %v468, %v464
    %v565 = vpack.c.b16 %v469, %v465
    %v566 = vpack.c.b16 %v470, %v466
    %v567 = vpack.c.b16 %v475, %v471
    %v568 = vpack.c.b16 %v476, %v472
    %v569 = vpack.c.b16 %v477, %v473
    %v570 = vpack.c.b16 %v478, %v474
    %v571 = vpack.c.b16 %v483, %v479
    %v572 = vpack.c.b16 %v484, %v480
    %v573 = vpack.c.b16 %v485, %v481
    %v574 = vpack.c.b16 %v486, %v482
    %v575 = vpack.c.b16 %v491, %v487
    %v576 = vpack.c.b16 %v492, %v488
    %v577 = vpack.c.b16 %v493, %v489
    %v578 = vpack.c.b16 %v494, %v490
    %v579 = vpack.c.b16 %v499, %v495
    %v580 = vpack.c.b16 %v500, %v496
    %v581 = vpack.c.b16 %v501, %v497
    %v582 = vpack.c.b16 %v502, %v498
    %v583 = vpack.c.b16 %v507, %v503
    %v584 = vpack.c.b16 %v508, %v504
    %v585 = vpack.c.b16 %v509, %v505
    %v586 = vpack.c.b16 %v510, %v506
    %v587 = vpack.c.b16 %v515, %v511
    %v588 = vpack.c.b16 %v516, %v512
    %v589 = vpack.c.b16 %v517, %v513
    %v590 = vpack.c.b16 %v518, %v514
    %v591 = vpack.c.b16 %v523, %v519
    %v592 = vpack.c.b16 %v524, %v520
    %v593 = vpack.c.b16 %v525, %v521
    %v594 = vpack.c.b16 %v526, %v522
    %v595 = vpack.c.b16 %v531, %v527
    %v596 = vpack.c.b16 %v532, %v528
    %v597 = vpack.c.b16 %v533, %v529
    %v598 = vpack.c.b16 %v534, %v530
    %v727 = vunpack.c.l.b16 %v87
    %v728 = vunpack.c.h.b16 %v87
    %v729 = vunpack.c.l.b16 %v88
    %v730 = vunpack.c.h.b16 %v88
    %v731 = vunpack.c.l.b16 %v89
    %v732 = vunpack.c.h.b16 %v89
    %v733 = vunpack.c.l.b16 %v90
    %v734 = vunpack.c.h.b16 %v90
    %v735 = vunpack.c.l.b16 %v91
    %v736 = vunpack.c.h.b16 %v91
    %v737 = vunpack.c.l.b16 %v92
    %v738 = vunpack.c.h.b16 %v92
    %v739 = vunpack.c.l.b16 %v93
    %v740 = vunpack.c.h.b16 %v93
    %v741 = vunpack.c.l.b16 %v94
    %v742 = vunpack.c.h.b16 %v94
    %v743 = vunpack.c.l.b16 %v95
    %v744 = vunpack.c.h.b16 %v95
    %v745 = vunpack.c.l.b16 %v96
    %v746 = vunpack.c.h.b16 %v96
    %v747 = vunpack.c.l.b16 %v97
    %v748 = vunpack.c.h.b16 %v97
    %v749 = vunpack.c.l.b16 %v98
    %v750 = vunpack.c.h.b16 %v98
    %v751 = vunpack.c.l.b16 %v99
    %v752 = vunpack.c.h.b16 %v99
    %v753 = vunpack.c.l.b16 %v100
    %v754 = vunpack.c.h.b16 %v100
    %v755 = vunpack.c.l.b16 %v101
    %v756 = vunpack.c.h.b16 %v101
    %v757 = vunpack.c.l.b16 %v102
    %v758 = vunpack.c.h.b16 %v102
    %v759 = vunpack.c.l.b16 %v103
    %v760 = vunpack.c.h.b16 %v103
    %v761 = vunpack.c.l.b16 %v104
    %v762 = vunpack.c.h.b16 %v104
    %v763 = vunpack.c.l.b16 %v105
    %v764 = vunpack.c.h.b16 %v105
    %v765 = vunpack.c.l.b16 %v106
    %v766 = vunpack.c.h.b16 %v106
    %v767 = vunpack.c.l.b16 %v107
    %v768 = vunpack.c.h.b16 %v107
    %v769 = vunpack.c.l.b16 %v108
    %v770 = vunpack.c.h.b16 %v108
    %v771 = vunpack.c.l.b16 %v109
    %v772 = vunpack.c.h.b16 %v109
    %v773 = vunpack.c.l.b16 %v110
    %v774 = vunpack.c.h.b16 %v110
    %v775 = vunpack.c.l.b16 %v111
    %v776 = vunpack.c.h.b16 %v111
    %v777 = vunpack.c.l.b16 %v112
    %v778 = vunpack.c.h.b16 %v112
    %v779 = vunpack.c.l.b16 %v113
    %v780 = vunpack.c.h.b16 %v113
    %v781 = vunpack.c.l.b16 %v114
    %v782 = vunpack.c.h.b16 %v114
    %v783 = vunpack.c.l.b16 %v115
    %v784 = vunpack.c.h.b16 %v115
    %v785 = vunpack.c.l.b16 %v116
    %v786 = vunpack.c.h.b16 %v116
    %v787 = vunpack.c.l.b16 %v117
    %v788 = vunpack.c.h.b16 %v117
    %v789 = vunpack.c.l.b16 %v118
    %v790 = vunpack.c.h.b16 %v118
    %v791 = vunpack.c.l.b16 %v119
    %v792 = vunpack.c.h.b16 %v119
    %v793 = vunpack.c.l.b16 %v120
    %v794 = vunpack.c.h.b16 %v120
    %v795 = vunpack.c.l.b16 %v121
    %v796 = vunpack.c.h.b16 %v121
    %v797 = vunpack.c.l.b16 %v122
    %v798 = vunpack.c.h.b16 %v122
    %v799 = vunpack.c.l.b16 %v123
    %v800 = vunpack.c.h.b16 %v123
    %v801 = vunpack.c.l.b16 %v124
    %v802 = vunpack.c.h.b16 %v124
    %v803 = vunpack.c.l.b16 %v125
    %v804 = vunpack.c.h.b16 %v125
    %v805 = vunpack.c.l.b16 %v126
    %v806 = vunpack.c.h.b16 %v126
    %v807 = vunpack.c.l.b16 %v127
    %v808 = vunpack.c.h.b16 %v127
    %v809 = vunpack.c.l.b16 %v128
    %v810 = vunpack.c.h.b16 %v128
    %v811 = vunpack.c.l.b16 %v129
    %v812 = vunpack.c.h.b16 %v129
    %v813 = vunpack.c.l.b16 %v130
    %v814 = vunpack.c.h.b16 %v130
    %v815 = vunpack.c.l.b16 %v131
    %v816 = vunpack.c.h.b16 %v131
    %v817 = vunpack.c.l.b16 %v132
    %v818 = vunpack.c.h.b16 %v132
    %v819 = vunpack.c.l.b16 %v133
    %v820 = vunpack.c.h.b16 %v133
    %v821 = vunpack.c.l.b16 %v134
    %v822 = vunpack.c.h.b16 %v134
    %v823 = vunpack.c.l.b16 %v135
    %v824 = vunpack.c.h.b16 %v135
    %v825 = vunpack.c.l.b16 %v136
    %v826 = vunpack.c.h.b16 %v136
    %v827 = vunpack.c.l.b16 %v137
    %v828 = vunpack.c.h.b16 %v137
    %v829 = vunpack.c.l.b16 %v138
    %v830 = vunpack.c.h.b16 %v138
    %v831 = vunpack.c.l.b16 %v139
    %v832 = vunpack.c.h.b16 %v139
    %v833 = vunpack.c.l.b16 %v140
    %v834 = vunpack.c.h.b16 %v140
    %v835 = vunpack.c.l.b16 %v141
    %v836 = vunpack.c.h.b16 %v141
    %v837 = vunpack.c.l.b16 %v142
    %v838 = vunpack.c.h.b16 %v142
    %v839 = vunpack.c.l.b16 %v143
    %v840 = vunpack.c.h.b16 %v143
    %v841 = vunpack.c.l.b16 %v144
    %v842 = vunpack.c.h.b16 %v144
    %v843 = vunpack.c.l.b16 %v145
    %v844 = vunpack.c.h.b16 %v145
    %v845 = vunpack.c.l.b16 %v146
    %v846 = vunpack.c.h.b16 %v146
    %v847 = vunpack.c.l.b16 %v147
    %v848 = vunpack.c.h.b16 %v147
    %v849 = vunpack.c.l.b16 %v148
    %v850 = vunpack.c.h.b16 %v148
    %v851 = vunpack.c.l.b16 %v149
    %v852 = vunpack.c.h.b16 %v149
    %v853 = vunpack.c.l.b16 %v150
    %v854 = vunpack.c.h.b16 %v150
    %v855 = vpack.c.b16 %v729, %v727
    %v856 = vpack.c.b16 %v730, %v728
    %v857 = vpack.c.b16 %v733, %v731
    %v858 = vpack.c.b16 %v734, %v732
    %v859 = vpack.c.b16 %v737, %v735
    %v860 = vpack.c.b16 %v738, %v736
    %v861 = vpack.c.b16 %v741, %v739
    %v862 = vpack.c.b16 %v742, %v740
    %v863 = vpack.c.b16 %v745, %v743
    %v864 = vpack.c.b16 %v746, %v744
    %v865 = vpack.c.b16 %v749, %v747
    %v866 = vpack.c.b16 %v750, %v748
    %v867 = vpack.c.b16 %v753, %v751
    %v868 = vpack.c.b16 %v754, %v752
    %v869 = vpack.c.b16 %v757, %v755
    %v870 = vpack.c.b16 %v758, %v756
    %v871 = vpack.c.b16 %v761, %v759
    %v872 = vpack.c.b16 %v762, %v760
    %v873 = vpack.c.b16 %v765, %v763
    %v874 = vpack.c.b16 %v766, %v764
    %v875 = vpack.c.b16 %v769, %v767
    %v876 = vpack.c.b16 %v770, %v768
    %v877 = vpack.c.b16 %v773, %v771
    %v878 = vpack.c.b16 %v774, %v772
    %v879 = vpack.c.b16 %v777, %v775
    %v880 = vpack.c.b16 %v778, %v776
    %v881 = vpack.c.b16 %v781, %v779
    %v882 = vpack.c.b16 %v782, %v780
    %v883 = vpack.c.b16 %v785, %v783
    %v884 = vpack.c.b16 %v786, %v784
    %v885 = vpack.c.b16 %v789, %v787
    %v886 = vpack.c.b16 %v790, %v788
    %v887 = vpack.c.b16 %v793, %v791
    %v888 = vpack.c.b16 %v794, %v792
    %v889 = vpack.c.b16 %v797, %v795
    %v890 = vpack.c.b16 %v798, %v796
    %v891 = vpack.c.b16 %v801, %v799
    %v892 = vpack.c.b16 %v802, %v800
    %v893 = vpack.c.b16 %v805, %v803
    %v894 = vpack.c.b16 %v806, %v804
    %v895 = vpack.c.b16 %v809, %v807
    %v896 = vpack.c.b16 %v810, %v808
    %v897 = vpack.c.b16 %v813, %v811
    %v898 = vpack.c.b16 %v814, %v812
    %v899 = vpack.c.b16 %v817, %v815
    %v900 = vpack.c.b16 %v818, %v816
    %v901 = vpack.c.b16 %v821, %v819
    %v902 = vpack.c.b16 %v822, %v820
    %v903 = vpack.c.b16 %v825, %v823
    %v904 = vpack.c.b16 %v826, %v824
    %v905 = vpack.c.b16 %v829, %v827
    %v906 = vpack.c.b16 %v830, %v828
    %v907 = vpack.c.b16 %v833, %v831
    %v908 = vpack.c.b16 %v834, %v832
    %v909 = vpack.c.b16 %v837, %v835
    %v910 = vpack.c.b16 %v838, %v836
    %v911 = vpack.c.b16 %v841, %v839
    %v912 = vpack.c.b16 %v842, %v840
    %v913 = vpack.c.b16 %v845, %v843
    %v914 = vpack.c.b16 %v846, %v844
    %v915 = vpack.c.b16 %v849, %v847
    %v916 = vpack.c.b16 %v850, %v848
    %v917 = vpack.c.b16 %v853, %v851
    %v918 = vpack.c.b16 %v854, %v852
    %983 = vmatprep.subr.bf16.mxu0 %v856
    %984 = vmatpush1.bf16.msra.mxu0 %v855
    %985 = vmatprep.subr.bf16.mxu0 %v858
    %986 = vmatpush1.bf16.msra.mxu0 %v857
    %987 = vmatprep.subr.bf16.mxu0 %v860
    %988 = vmatpush1.bf16.msra.mxu0 %v859
    %989 = vmatprep.subr.bf16.mxu0 %v862
    %990 = vmatpush1.bf16.msra.mxu0 %v861
    %991 = vmatprep.subr.bf16.mxu0 %v864
    %992 = vmatpush1.bf16.msra.mxu0 %v863
    %993 = vmatprep.subr.bf16.mxu0 %v866
    %994 = vmatpush1.bf16.msra.mxu0 %v865
    %995 = vmatprep.subr.bf16.mxu0 %v868
    %996 = vmatpush1.bf16.msra.mxu0 %v867
    %997 = vmatprep.subr.bf16.mxu0 %v870
    %998 = vmatpush1.bf16.msra.mxu0 %v869
    %999 = vmatprep.subr.bf16.mxu0 %v872
    %1000 = vmatpush1.bf16.msra.mxu0 %v871
    %1001 = vmatprep.subr.bf16.mxu0 %v874
    %1002 = vmatpush1.bf16.msra.mxu0 %v873
    %1003 = vmatprep.subr.bf16.mxu0 %v876
    %1004 = vmatpush1.bf16.msra.mxu0 %v875
    %1005 = vmatprep.subr.bf16.mxu0 %v878
    %1006 = vmatpush1.bf16.msra.mxu0 %v877
    %1007 = vmatprep.subr.bf16.mxu0 %v880
    %1008 = vmatpush1.bf16.msra.mxu0 %v879
    %1009 = vmatprep.subr.bf16.mxu0 %v882
    %1010 = vmatpush1.bf16.msra.mxu0 %v881
    %1011 = vmatprep.subr.bf16.mxu0 %v884
    %1012 = vmatpush1.bf16.msra.mxu0 %v883
    %1013 = vmatprep.subr.bf16.mxu0 %v886
    %1014 = vmatpush1.bf16.msra.mxu0 %v885
    %1015 = vmatprep.mubr.bf16.mxu0 %v536
    %1016 = vmatmul.mubr.bf16.gmra.mrb[0].mxu0 %v535
    %v1017 = vpop.f32.mrb[0].mxu0
    %v1018 = vadd.f32 %v186, %v1017
    %v1019 = vpop.f32.mrb[0].mxu0
    %v1020 = vadd.f32 %v186, %v1019
    %v1021 = vpop.f32.mrb[0].mxu0
    %v1022 = vadd.f32 %v191, %v1021
    %v1023 = vpop.f32.mrb[0].mxu0
    %v1024 = vadd.f32 %v191, %v1023
    %1025 = vmatprep.mubr.bf16.mxu0 %v540
    %1026 = vmatmul.mubr.bf16.gmra.mrb[0].mxu0 %v539
    %v1027 = vpop.f32.mrb[0].mxu0
    %v1028 = vadd.f32 %v196, %v1027
    %v1029 = vpop.f32.mrb[0].mxu0
    %v1030 = vadd.f32 %v196, %v1029
    %v1031 = vpop.f32.mrb[0].mxu0
    %v1032 = vadd.f32 %v201, %v1031
    %v1033 = vpop.f32.mrb[0].mxu0
    %v1034 = vadd.f32 %v201, %v1033
    %1035 = vmatprep.mubr.bf16.mxu0 %v544
    %1036 = vmatmul.mubr.bf16.gmra.mrb[0].mxu0 %v543
    %v1037 = vpop.f32.mrb[0].mxu0
    %v1038 = vadd.f32 %v206, %v1037
    %v1039 = vpop.f32.mrb[0].mxu0
    %v1040 = vadd.f32 %v206, %v1039
    %v1041 = vpop.f32.mrb[0].mxu0
    %v1042 = vadd.f32 %v211, %v1041
    %v1043 = vpop.f32.mrb[0].mxu0
    %v1044 = vadd.f32 %v211, %v1043
    %1045 = vmatprep.mubr.bf16.mxu0 %v548
    %1046 = vmatmul.mubr.bf16.gmra.mrb[0].mxu0 %v547
    %v1047 = vpop.f32.mrb[0].mxu0
    %v1048 = vadd.f32 %v216, %v1047
    %v1049 = vpop.f32.mrb[0].mxu0
    %v1050 = vadd.f32 %v216, %v1049
    %v1051 = vpop.f32.mrb[0].mxu0
    %v1052 = vadd.f32 %v221, %v1051
    %v1053 = vpop.f32.mrb[0].mxu0
    %v1054 = vadd.f32 %v221, %v1053
    %1055 = vmatprep.mubr.bf16.mxu0 %v552
    %1056 = vmatmul.mubr.bf16.gmra.mrb[0].mxu0 %v551
    %v1057 = vpop.f32.mrb[0].mxu0
    %v1058 = vadd.f32 %v226, %v1057
    %v1059 = vpop.f32.mrb[0].mxu0
    %v1060 = vadd.f32 %v226, %v1059
    %v1061 = vpop.f32.mrb[0].mxu0
    %v1062 = vadd.f32 %v231, %v1061
    %v1063 = vpop.f32.mrb[0].mxu0
    %v1064 = vadd.f32 %v231, %v1063
    %1065 = vmatprep.mubr.bf16.mxu0 %v556
    %1066 = vmatmul.mubr.bf16.gmra.mrb[0].mxu0 %v555
    %v1067 = vpop.f32.mrb[0].mxu0
    %v1068 = vadd.f32 %v236, %v1067
    %v1069 = vpop.f32.mrb[0].mxu0
    %v1070 = vadd.f32 %v236, %v1069
    %v1071 = vpop.f32.mrb[0].mxu0
    %v1072 = vadd.f32 %v241, %v1071
    %v1073 = vpop.f32.mrb[0].mxu0
    %v1074 = vadd.f32 %v241, %v1073
    %1075 = vmatprep.mubr.bf16.mxu0 %v560
    %1076 = vmatmul.mubr.bf16.gmra.mrb[0].mxu0 %v559
    %v1077 = vpop.f32.mrb[0].mxu0
    %v1078 = vadd.f32 %v246, %v1077
    %v1079 = vpop.f32.mrb[0].mxu0
    %v1080 = vadd.f32 %v246, %v1079
    %v1081 = vpop.f32.mrb[0].mxu0
    %v1082 = vadd.f32 %v251, %v1081
    %v1083 = vpop.f32.mrb[0].mxu0
    %v1084 = vadd.f32 %v251, %v1083
    %1085 = vmatprep.mubr.bf16.mxu0 %v564
    %1086 = vmatmul.mubr.bf16.gmra.mrb[0].mxu0 %v563
    %v1087 = vpop.f32.mrb[0].mxu0
    %v1088 = vadd.f32 %v256, %v1087
    %v1089 = vpop.f32.mrb[0].mxu0
    %v1090 = vadd.f32 %v256, %v1089
    %v1091 = vpop.f32.mrb[0].mxu0
    %v1092 = vadd.f32 %v261, %v1091
    %v1093 = vpop.f32.mrb[0].mxu0
    %v1094 = vadd.f32 %v261, %v1093
    %1095 = vmatprep.mubr.bf16.mxu0 %v568
    %1096 = vmatmul.mubr.bf16.gmra.mrb[0].mxu0 %v567
    %v1097 = vpop.f32.mrb[0].mxu0
    %v1098 = vadd.f32 %v266, %v1097
    %v1099 = vpop.f32.mrb[0].mxu0
    %v1100 = vadd.f32 %v266, %v1099
    %v1101 = vpop.f32.mrb[0].mxu0
    %v1102 = vadd.f32 %v271, %v1101
    %v1103 = vpop.f32.mrb[0].mxu0
    %v1104 = vadd.f32 %v271, %v1103
    %1105 = vmatprep.mubr.bf16.mxu0 %v572
    %1106 = vmatmul.mubr.bf16.gmra.mrb[0].mxu0 %v571
    %v1107 = vpop.f32.mrb[0].mxu0
    %v1108 = vadd.f32 %v276, %v1107
    %v1109 = vpop.f32.mrb[0].mxu0
    %v1110 = vadd.f32 %v276, %v1109
    %v1111 = vpop.f32.mrb[0].mxu0
    %v1112 = vadd.f32 %v281, %v1111
    %v1113 = vpop.f32.mrb[0].mxu0
    %v1114 = vadd.f32 %v281, %v1113
    %1115 = vmatprep.mubr.bf16.mxu0 %v576
    %1116 = vmatmul.mubr.bf16.gmra.mrb[0].mxu0 %v575
    %v1117 = vpop.f32.mrb[0].mxu0
    %v1118 = vadd.f32 %v286, %v1117
    %v1119 = vpop.f32.mrb[0].mxu0
    %v1120 = vadd.f32 %v286, %v1119
    %v1121 = vpop.f32.mrb[0].mxu0
    %v1122 = vadd.f32 %v291, %v1121
    %v1123 = vpop.f32.mrb[0].mxu0
    %v1124 = vadd.f32 %v291, %v1123
    %1125 = vmatprep.mubr.bf16.mxu0 %v580
    %1126 = vmatmul.mubr.bf16.gmra.mrb[0].mxu0 %v579
    %v1127 = vpop.f32.mrb[0].mxu0
    %v1128 = vadd.f32 %v296, %v1127
    %v1129 = vpop.f32.mrb[0].mxu0
    %v1130 = vadd.f32 %v296, %v1129
    %v1131 = vpop.f32.mrb[0].mxu0
    %v1132 = vadd.f32 %v301, %v1131
    %v1133 = vpop.f32.mrb[0].mxu0
    %v1134 = vadd.f32 %v301, %v1133
    %1135 = vmatprep.mubr.bf16.mxu0 %v584
    %1136 = vmatmul.mubr.bf16.gmra.mrb[0].mxu0 %v583
    %v1137 = vpop.f32.mrb[0].mxu0
    %v1138 = vadd.f32 %v306, %v1137
    %v1139 = vpop.f32.mrb[0].mxu0
    %v1140 = vadd.f32 %v306, %v1139
    %v1141 = vpop.f32.mrb[0].mxu0
    %v1142 = vadd.f32 %v311, %v1141
    %v1143 = vpop.f32.mrb[0].mxu0
    %v1144 = vadd.f32 %v311, %v1143
    %1145 = vmatprep.mubr.bf16.mxu0 %v588
    %1146 = vmatmul.mubr.bf16.gmra.mrb[0].mxu0 %v587
    %v1147 = vpop.f32.mrb[0].mxu0
    %v1148 = vadd.f32 %v316, %v1147
    %v1149 = vpop.f32.mrb[0].mxu0
    %v1150 = vadd.f32 %v316, %v1149
    %v1151 = vpop.f32.mrb[0].mxu0
    %v1152 = vadd.f32 %v321, %v1151
    %v1153 = vpop.f32.mrb[0].mxu0
    %v1154 = vadd.f32 %v321, %v1153
    %1155 = vmatprep.mubr.bf16.mxu0 %v592
    %1156 = vmatmul.mubr.bf16.gmra.mrb[0].mxu0 %v591
    %v1157 = vpop.f32.mrb[0].mxu0
    %v1158 = vadd.f32 %v326, %v1157
    %v1159 = vpop.f32.mrb[0].mxu0
    %v1160 = vadd.f32 %v326, %v1159
    %v1161 = vpop.f32.mrb[0].mxu0
    %v1162 = vadd.f32 %v331, %v1161
    %v1163 = vpop.f32.mrb[0].mxu0
    %v1164 = vadd.f32 %v331, %v1163
    %1165 = vmatprep.mubr.bf16.mxu0 %v596
    %1166 = vmatmul.mubr.bf16.gmra.mrb[0].mxu0 %v595
    %v1167 = vpop.f32.mrb[0].mxu0
    %v1168 = vadd.f32 %v336, %v1167
    %v1169 = vpop.f32.mrb[0].mxu0
    %v1170 = vadd.f32 %v336, %v1169
    %v1171 = vpop.f32.mrb[0].mxu0
    %v1172 = vadd.f32 %v341, %v1171
    %v1173 = vpop.f32.mrb[0].mxu0
    %v1174 = vadd.f32 %v341, %v1173
    %1175 = vdwg.mxu0
    %1176 = vmatprep.subr.bf16.mxu0 %v888
    %1177 = vmatpush1.bf16.msra.mxu0 %v887
    %1178 = vmatprep.subr.bf16.mxu0 %v890
    %1179 = vmatpush1.bf16.msra.mxu0 %v889
    %1180 = vmatprep.subr.bf16.mxu0 %v892
    %1181 = vmatpush1.bf16.msra.mxu0 %v891
    %1182 = vmatprep.subr.bf16.mxu0 %v894
    %1183 = vmatpush1.bf16.msra.mxu0 %v893
    %1184 = vmatprep.subr.bf16.mxu0 %v896
    %1185 = vmatpush1.bf16.msra.mxu0 %v895
    %1186 = vmatprep.subr.bf16.mxu0 %v898
    %1187 = vmatpush1.bf16.msra.mxu0 %v897
    %1188 = vmatprep.subr.bf16.mxu0 %v900
    %1189 = vmatpush1.bf16.msra.mxu0 %v899
    %1190 = vmatprep.subr.bf16.mxu0 %v902
    %1191 = vmatpush1.bf16.msra.mxu0 %v901
    %1192 = vmatprep.subr.bf16.mxu0 %v904
    %1193 = vmatpush1.bf16.msra.mxu0 %v903
    %1194 = vmatprep.subr.bf16.mxu0 %v906
    %1195 = vmatpush1.bf16.msra.mxu0 %v905
    %1196 = vmatprep.subr.bf16.mxu0 %v908
    %1197 = vmatpush1.bf16.msra.mxu0 %v907
    %1198 = vmatprep.subr.bf16.mxu0 %v910
    %1199 = vmatpush1.bf16.msra.mxu0 %v909
    %1200 = vmatprep.subr.bf16.mxu0 %v912
    %1201 = vmatpush1.bf16.msra.mxu0 %v911
    %1202 = vmatprep.subr.bf16.mxu0 %v914
    %1203 = vmatpush1.bf16.msra.mxu0 %v913
    %1204 = vmatprep.subr.bf16.mxu0 %v916
    %1205 = vmatpush1.bf16.msra.mxu0 %v915
    %1206 = vmatprep.subr.bf16.mxu0 %v918
    %1207 = vmatpush1.bf16.msra.mxu0 %v917
    %1208 = vmatprep.mubr.bf16.mxu0 %v538
    %1209 = vmatmul.mubr.bf16.gmra.mrb[0].mxu0 %v537
    %v1210 = vpop.f32.mrb[0].mxu0
    %v1211 = vadd.f32 %v1018, %v1210
    %v1212 = vpop.f32.mrb[0].mxu0
    %v1213 = vadd.f32 %v1020, %v1212
    %v1214 = vpop.f32.mrb[0].mxu0
    %v1215 = vadd.f32 %v1022, %v1214
    %v1216 = vpop.f32.mrb[0].mxu0
    %v1217 = vadd.f32 %v1024, %v1216
    %1218 = vmatprep.mubr.bf16.mxu0 %v542
    %1219 = vmatmul.mubr.bf16.gmra.mrb[0].mxu0 %v541
    %v1220 = vpop.f32.mrb[0].mxu0
    %v1221 = vadd.f32 %v1028, %v1220
    %v1222 = vpop.f32.mrb[0].mxu0
    %v1223 = vadd.f32 %v1030, %v1222
    %v1224 = vpop.f32.mrb[0].mxu0
    %v1225 = vadd.f32 %v1032, %v1224
    %v1226 = vpop.f32.mrb[0].mxu0
    %v1227 = vadd.f32 %v1034, %v1226
    %1228 = vmatprep.mubr.bf16.mxu0 %v546
    %1229 = vmatmul.mubr.bf16.gmra.mrb[0].mxu0 %v545
    %v1230 = vpop.f32.mrb[0].mxu0
    %v1231 = vadd.f32 %v1038, %v1230
    %v1232 = vpop.f32.mrb[0].mxu0
    %v1233 = vadd.f32 %v1040, %v1232
    %v1234 = vpop.f32.mrb[0].mxu0
    %v1235 = vadd.f32 %v1042, %v1234
    %v1236 = vpop.f32.mrb[0].mxu0
    %v1237 = vadd.f32 %v1044, %v1236
    %1238 = vmatprep.mubr.bf16.mxu0 %v550
    %1239 = vmatmul.mubr.bf16.gmra.mrb[0].mxu0 %v549
    %v1240 = vpop.f32.mrb[0].mxu0
    %v1241 = vadd.f32 %v1048, %v1240
    %v1242 = vpop.f32.mrb[0].mxu0
    %v1243 = vadd.f32 %v1050, %v1242
    %v1244 = vpop.f32.mrb[0].mxu0
    %v1245 = vadd.f32 %v1052, %v1244
    %v1246 = vpop.f32.mrb[0].mxu0
    %v1247 = vadd.f32 %v1054, %v1246
    %1248 = vmatprep.mubr.bf16.mxu0 %v554
    %1249 = vmatmul.mubr.bf16.gmra.mrb[0].mxu0 %v553
    %v1250 = vpop.f32.mrb[0].mxu0
    %v1251 = vadd.f32 %v1058, %v1250
    %v1252 = vpop.f32.mrb[0].mxu0
    %v1253 = vadd.f32 %v1060, %v1252
    %v1254 = vpop.f32.mrb[0].mxu0
    %v1255 = vadd.f32 %v1062, %v1254
    %v1256 = vpop.f32.mrb[0].mxu0
    %v1257 = vadd.f32 %v1064, %v1256
    %1258 = vmatprep.mubr.bf16.mxu0 %v558
    %1259 = vmatmul.mubr.bf16.gmra.mrb[0].mxu0 %v557
    %v1260 = vpop.f32.mrb[0].mxu0
    %v1261 = vadd.f32 %v1068, %v1260
    %v1262 = vpop.f32.mrb[0].mxu0
    %v1263 = vadd.f32 %v1070, %v1262
    %v1264 = vpop.f32.mrb[0].mxu0
    %v1265 = vadd.f32 %v1072, %v1264
    %v1266 = vpop.f32.mrb[0].mxu0
    %v1267 = vadd.f32 %v1074, %v1266
    %1268 = vmatprep.mubr.bf16.mxu0 %v562
    %1269 = vmatmul.mubr.bf16.gmra.mrb[0].mxu0 %v561
    %v1270 = vpop.f32.mrb[0].mxu0
    %v1271 = vadd.f32 %v1078, %v1270
    %v1272 = vpop.f32.mrb[0].mxu0
    %v1273 = vadd.f32 %v1080, %v1272
    %v1274 = vpop.f32.mrb[0].mxu0
    %v1275 = vadd.f32 %v1082, %v1274
    %v1276 = vpop.f32.mrb[0].mxu0
    %v1277 = vadd.f32 %v1084, %v1276
    %1278 = vmatprep.mubr.bf16.mxu0 %v566
    %1279 = vmatmul.mubr.bf16.gmra.mrb[0].mxu0 %v565
    %v1280 = vpop.f32.mrb[0].mxu0
    %v1281 = vadd.f32 %v1088, %v1280
    %v1282 = vpop.f32.mrb[0].mxu0
    %v1283 = vadd.f32 %v1090, %v1282
    %v1284 = vpop.f32.mrb[0].mxu0
    %v1285 = vadd.f32 %v1092, %v1284
    %v1286 = vpop.f32.mrb[0].mxu0
    %v1287 = vadd.f32 %v1094, %v1286
    %1288 = vmatprep.mubr.bf16.mxu0 %v570
    %1289 = vmatmul.mubr.bf16.gmra.mrb[0].mxu0 %v569
    %v1290 = vpop.f32.mrb[0].mxu0
    %v1291 = vadd.f32 %v1098, %v1290
    %v1292 = vpop.f32.mrb[0].mxu0
    %v1293 = vadd.f32 %v1100, %v1292
    %v1294 = vpop.f32.mrb[0].mxu0
    %v1295 = vadd.f32 %v1102, %v1294
    %v1296 = vpop.f32.mrb[0].mxu0
    %v1297 = vadd.f32 %v1104, %v1296
    %1298 = vmatprep.mubr.bf16.mxu0 %v574
    %1299 = vmatmul.mubr.bf16.gmra.mrb[0].mxu0 %v573
    %v1300 = vpop.f32.mrb[0].mxu0
    %v1301 = vadd.f32 %v1108, %v1300
    %v1302 = vpop.f32.mrb[0].mxu0
    %v1303 = vadd.f32 %v1110, %v1302
    %v1304 = vpop.f32.mrb[0].mxu0
    %v1305 = vadd.f32 %v1112, %v1304
    %v1306 = vpop.f32.mrb[0].mxu0
    %v1307 = vadd.f32 %v1114, %v1306
    %1308 = vmatprep.mubr.bf16.mxu0 %v578
    %1309 = vmatmul.mubr.bf16.gmra.mrb[0].mxu0 %v577
    %v1310 = vpop.f32.mrb[0].mxu0
    %v1311 = vadd.f32 %v1118, %v1310
    %v1312 = vpop.f32.mrb[0].mxu0
    %v1313 = vadd.f32 %v1120, %v1312
    %v1314 = vpop.f32.mrb[0].mxu0
    %v1315 = vadd.f32 %v1122, %v1314
    %v1316 = vpop.f32.mrb[0].mxu0
    %v1317 = vadd.f32 %v1124, %v1316
    %1318 = vmatprep.mubr.bf16.mxu0 %v582
    %1319 = vmatmul.mubr.bf16.gmra.mrb[0].mxu0 %v581
    %v1320 = vpop.f32.mrb[0].mxu0
    %v1321 = vadd.f32 %v1128, %v1320
    %v1322 = vpop.f32.mrb[0].mxu0
    %v1323 = vadd.f32 %v1130, %v1322
    %v1324 = vpop.f32.mrb[0].mxu0
    %v1325 = vadd.f32 %v1132, %v1324
    %v1326 = vpop.f32.mrb[0].mxu0
    %v1327 = vadd.f32 %v1134, %v1326
    %1328 = vmatprep.mubr.bf16.mxu0 %v586
    %1329 = vmatmul.mubr.bf16.gmra.mrb[0].mxu0 %v585
    %v1330 = vpop.f32.mrb[0].mxu0
    %v1331 = vadd.f32 %v1138, %v1330
    %v1332 = vpop.f32.mrb[0].mxu0
    %v1333 = vadd.f32 %v1140, %v1332
    %v1334 = vpop.f32.mrb[0].mxu0
    %v1335 = vadd.f32 %v1142, %v1334
    %v1336 = vpop.f32.mrb[0].mxu0
    %v1337 = vadd.f32 %v1144, %v1336
    %1338 = vmatprep.mubr.bf16.mxu0 %v590
    %1339 = vmatmul.mubr.bf16.gmra.mrb[0].mxu0 %v589
    %v1340 = vpop.f32.mrb[0].mxu0
    %v1341 = vadd.f32 %v1148, %v1340
    %v1342 = vpop.f32.mrb[0].mxu0
    %v1343 = vadd.f32 %v1150, %v1342
    %v1344 = vpop.f32.mrb[0].mxu0
    %v1345 = vadd.f32 %v1152, %v1344
    %v1346 = vpop.f32.mrb[0].mxu0
    %v1347 = vadd.f32 %v1154, %v1346
    %1348 = vmatprep.mubr.bf16.mxu0 %v594
    %1349 = vmatmul.mubr.bf16.gmra.mrb[0].mxu0 %v593
    %v1350 = vpop.f32.mrb[0].mxu0
    %v1351 = vadd.f32 %v1158, %v1350
    %v1352 = vpop.f32.mrb[0].mxu0
    %v1353 = vadd.f32 %v1160, %v1352
    %v1354 = vpop.f32.mrb[0].mxu0
    %v1355 = vadd.f32 %v1162, %v1354
    %v1356 = vpop.f32.mrb[0].mxu0
    %v1357 = vadd.f32 %v1164, %v1356
    %1358 = vmatprep.mubr.bf16.mxu0 %v598
    %1359 = vmatmul.mubr.bf16.gmra.mrb[0].mxu0 %v597
    %v1360 = vpop.f32.mrb[0].mxu0
    %v1361 = vadd.f32 %v1168, %v1360
    %v1362 = vpop.f32.mrb[0].mxu0
    %v1363 = vadd.f32 %v1170, %v1362
    %v1364 = vpop.f32.mrb[0].mxu0
    %v1365 = vadd.f32 %v1172, %v1364
    %v1366 = vpop.f32.mrb[0].mxu0
    %v1367 = vadd.f32 %v1174, %v1366
    %1368 = vdwg.mxu0
    %v1369 = vtanh.pop %v1211
    %v1370 = vtanh.pop %v1213
    %v1371 = vtanh.pop %v1215
    %v1372 = vtanh.pop %v1217
    %v1373 = vtanh.pop %v1221
    %v1374 = vtanh.pop %v1223
    %v1375 = vtanh.pop %v1225
    %v1376 = vtanh.pop %v1227
    %v1377 = vtanh.pop %v1231
    %v1378 = vtanh.pop %v1233
    %v1379 = vtanh.pop %v1235
    %v1380 = vtanh.pop %v1237
    %v1381 = vtanh.pop %v1241
    %v1382 = vtanh.pop %v1243
    %v1383 = vtanh.pop %v1245
    %v1384 = vtanh.pop %v1247
    %v1385 = vtanh.pop %v1251
    %v1386 = vtanh.pop %v1253
    %v1387 = vtanh.pop %v1255
    %v1388 = vtanh.pop %v1257
    %v1389 = vtanh.pop %v1261
    %v1390 = vtanh.pop %v1263
    %v1391 = vtanh.pop %v1265
    %v1392 = vtanh.pop %v1267
    %v1393 = vtanh.pop %v1271
    %v1394 = vtanh.pop %v1273
    %v1395 = vtanh.pop %v1275
    %v1396 = vtanh.pop %v1277
    %v1397 = vtanh.pop %v1281
    %v1398 = vtanh.pop %v1283
    %v1399 = vtanh.pop %v1285
    %v1400 = vtanh.pop %v1287
    %v1401 = vxor.u32 %v1291, 2147483648
    %v1402 = vxor.u32 %v1293, 2147483648
    %v1403 = vxor.u32 %v1295, 2147483648
    %v1404 = vxor.u32 %v1297, 2147483648
    %v1405 = vxor.u32 %v1301, 2147483648
    %v1406 = vxor.u32 %v1303, 2147483648
    %v1407 = vxor.u32 %v1305, 2147483648
    %v1408 = vxor.u32 %v1307, 2147483648
    %v1409 = vxor.u32 %v1311, 2147483648
    %v1410 = vxor.u32 %v1313, 2147483648
    %v1411 = vxor.u32 %v1315, 2147483648
    %v1412 = vxor.u32 %v1317, 2147483648
    %v1413 = vxor.u32 %v1321, 2147483648
    %v1414 = vxor.u32 %v1323, 2147483648
    %v1415 = vxor.u32 %v1325, 2147483648
    %v1416 = vxor.u32 %v1327, 2147483648
    %v1417 = vxor.u32 %v1331, 2147483648
    %v1418 = vxor.u32 %v1333, 2147483648
    %v1419 = vxor.u32 %v1335, 2147483648
    %v1420 = vxor.u32 %v1337, 2147483648
    %v1421 = vxor.u32 %v1341, 2147483648
    %v1422 = vxor.u32 %v1343, 2147483648
    %v1423 = vxor.u32 %v1345, 2147483648
    %v1424 = vxor.u32 %v1347, 2147483648
    %v1425 = vxor.u32 %v1351, 2147483648
    %v1426 = vxor.u32 %v1353, 2147483648
    %v1427 = vxor.u32 %v1355, 2147483648
    %v1428 = vxor.u32 %v1357, 2147483648
    %v1429 = vxor.u32 %v1361, 2147483648
    %v1430 = vxor.u32 %v1363, 2147483648
    %v1431 = vxor.u32 %v1365, 2147483648
    %v1432 = vxor.u32 %v1367, 2147483648
    %v1433 = vmul.f32 %v1401, 1.442695
    %v1434 = vpow.pop %v1433
    %v1435 = vmul.f32 %v1402, 1.442695
    %v1436 = vpow.pop %v1435
    %v1437 = vmul.f32 %v1403, 1.442695
    %v1438 = vpow.pop %v1437
    %v1439 = vmul.f32 %v1404, 1.442695
    %v1440 = vpow.pop %v1439
    %v1441 = vmul.f32 %v1405, 1.442695
    %v1442 = vpow.pop %v1441
    %v1443 = vmul.f32 %v1406, 1.442695
    %v1444 = vpow.pop %v1443
    %v1445 = vmul.f32 %v1407, 1.442695
    %v1446 = vpow.pop %v1445
    %v1447 = vmul.f32 %v1408, 1.442695
    %v1448 = vpow.pop %v1447
    %v1449 = vmul.f32 %v1409, 1.442695
    %v1450 = vpow.pop %v1449
    %v1451 = vmul.f32 %v1410, 1.442695
    %v1452 = vpow.pop %v1451
    %v1453 = vmul.f32 %v1411, 1.442695
    %v1454 = vpow.pop %v1453
    %v1455 = vmul.f32 %v1412, 1.442695
    %v1456 = vpow.pop %v1455
    %v1457 = vmul.f32 %v1413, 1.442695
    %v1458 = vpow.pop %v1457
    %v1459 = vmul.f32 %v1414, 1.442695
    %v1460 = vpow.pop %v1459
    %v1461 = vmul.f32 %v1415, 1.442695
    %v1462 = vpow.pop %v1461
    %v1463 = vmul.f32 %v1416, 1.442695
    %v1464 = vpow.pop %v1463
    %v1465 = vmul.f32 %v1417, 1.442695
    %v1466 = vpow.pop %v1465
    %v1467 = vmul.f32 %v1418, 1.442695
    %v1468 = vpow.pop %v1467
    %v1469 = vmul.f32 %v1419, 1.442695
    %v1470 = vpow.pop %v1469
    %v1471 = vmul.f32 %v1420, 1.442695
    %v1472 = vpow.pop %v1471
    %v1473 = vmul.f32 %v1421, 1.442695
    %v1474 = vpow.pop %v1473
    %v1475 = vmul.f32 %v1422, 1.442695
    %v1476 = vpow.pop %v1475
    %v1477 = vmul.f32 %v1423, 1.442695
    %v1478 = vpow.pop %v1477
    %v1479 = vmul.f32 %v1424, 1.442695
    %v1480 = vpow.pop %v1479
    %v1481 = vmul.f32 %v1425, 1.442695
    %v1482 = vpow.pop %v1481
    %v1483 = vmul.f32 %v1426, 1.442695
    %v1484 = vpow.pop %v1483
    %v1485 = vmul.f32 %v1427, 1.442695
    %v1486 = vpow.pop %v1485
    %v1487 = vmul.f32 %v1428, 1.442695
    %v1488 = vpow.pop %v1487
    %v1489 = vmul.f32 %v1429, 1.442695
    %v1490 = vpow.pop %v1489
    %v1491 = vmul.f32 %v1430, 1.442695
    %v1492 = vpow.pop %v1491
    %v1493 = vmul.f32 %v1431, 1.442695
    %v1494 = vpow.pop %v1493
    %v1495 = vmul.f32 %v1432, 1.442695
    %v1496 = vpow.pop %v1495
    %v1497 = vadd.f32 %v1434, 1.0
    %v1498 = vadd.f32 %v1436, 1.0
    %v1499 = vadd.f32 %v1438, 1.0
    %v1500 = vadd.f32 %v1440, 1.0
    %v1501 = vadd.f32 %v1442, 1.0
    %v1502 = vadd.f32 %v1444, 1.0
    %v1503 = vadd.f32 %v1446, 1.0
    %v1504 = vadd.f32 %v1448, 1.0
    %v1505 = vadd.f32 %v1450, 1.0
    %v1506 = vadd.f32 %v1452, 1.0
    %v1507 = vadd.f32 %v1454, 1.0
    %v1508 = vadd.f32 %v1456, 1.0
    %v1509 = vadd.f32 %v1458, 1.0
    %v1510 = vadd.f32 %v1460, 1.0
    %v1511 = vadd.f32 %v1462, 1.0
    %v1512 = vadd.f32 %v1464, 1.0
    %v1513 = vadd.f32 %v1466, 1.0
    %v1514 = vadd.f32 %v1468, 1.0
    %v1515 = vadd.f32 %v1470, 1.0
    %v1516 = vadd.f32 %v1472, 1.0
    %v1517 = vadd.f32 %v1474, 1.0
    %v1518 = vadd.f32 %v1476, 1.0
    %v1519 = vadd.f32 %v1478, 1.0
    %v1520 = vadd.f32 %v1480, 1.0
    %v1521 = vadd.f32 %v1482, 1.0
    %v1522 = vadd.f32 %v1484, 1.0
    %v1523 = vadd.f32 %v1486, 1.0
    %v1524 = vadd.f32 %v1488, 1.0
    %v1525 = vadd.f32 %v1490, 1.0
    %v1526 = vadd.f32 %v1492, 1.0
    %v1527 = vadd.f32 %v1494, 1.0
    %v1528 = vadd.f32 %v1496, 1.0
    %v1529 = vrcp.pop %v1497
    %v1530 = vmul.f32 1.0, %v1529
    %v1531 = vrcp.pop %v1498
    %v1532 = vmul.f32 1.0, %v1531
    %v1533 = vrcp.pop %v1499
    %v1534 = vmul.f32 1.0, %v1533
    %v1535 = vrcp.pop %v1500
    %v1536 = vmul.f32 1.0, %v1535
    %v1537 = vrcp.pop %v1501
    %v1538 = vmul.f32 1.0, %v1537
    %v1539 = vrcp.pop %v1502
    %v1540 = vmul.f32 1.0, %v1539
    %v1541 = vrcp.pop %v1503
    %v1542 = vmul.f32 1.0, %v1541
    %v1543 = vrcp.pop %v1504
    %v1544 = vmul.f32 1.0, %v1543
    %v1545 = vrcp.pop %v1505
    %v1546 = vmul.f32 1.0, %v1545
    %v1547 = vrcp.pop %v1506
    %v1548 = vmul.f32 1.0, %v1547
    %v1549 = vrcp.pop %v1507
    %v1550 = vmul.f32 1.0, %v1549
    %v1551 = vrcp.pop %v1508
    %v1552 = vmul.f32 1.0, %v1551
    %v1553 = vrcp.pop %v1509
    %v1554 = vmul.f32 1.0, %v1553
    %v1555 = vrcp.pop %v1510
    %v1556 = vmul.f32 1.0, %v1555
    %v1557 = vrcp.pop %v1511
    %v1558 = vmul.f32 1.0, %v1557
    %v1559 = vrcp.pop %v1512
    %v1560 = vmul.f32 1.0, %v1559
    %v1561 = vrcp.pop %v1513
    %v1562 = vmul.f32 1.0, %v1561
    %v1563 = vrcp.pop %v1514
    %v1564 = vmul.f32 1.0, %v1563
    %v1565 = vrcp.pop %v1515
    %v1566 = vmul.f32 1.0, %v1565
    %v1567 = vrcp.pop %v1516
    %v1568 = vmul.f32 1.0, %v1567
    %v1569 = vrcp.pop %v1517
    %v1570 = vmul.f32 1.0, %v1569
    %v1571 = vrcp.pop %v1518
    %v1572 = vmul.f32 1.0, %v1571
    %v1573 = vrcp.pop %v1519
    %v1574 = vmul.f32 1.0, %v1573
    %v1575 = vrcp.pop %v1520
    %v1576 = vmul.f32 1.0, %v1575
    %v1577 = vrcp.pop %v1521
    %v1578 = vmul.f32 1.0, %v1577
    %v1579 = vrcp.pop %v1522
    %v1580 = vmul.f32 1.0, %v1579
    %v1581 = vrcp.pop %v1523
    %v1582 = vmul.f32 1.0, %v1581
    %v1583 = vrcp.pop %v1524
    %v1584 = vmul.f32 1.0, %v1583
    %v1585 = vrcp.pop %v1525
    %v1586 = vmul.f32 1.0, %v1585
    %v1587 = vrcp.pop %v1526
    %v1588 = vmul.f32 1.0, %v1587
    %v1589 = vrcp.pop %v1527
    %v1590 = vmul.f32 1.0, %v1589
    %v1591 = vrcp.pop %v1528
    %v1592 = vmul.f32 1.0, %v1591
    %v1593 = vmul.f32 %v1369, %v1530
    %v1594 = vmul.f32 %v1370, %v1532
    %v1595 = vmul.f32 %v1371, %v1534
    %v1596 = vmul.f32 %v1372, %v1536
    %v1597 = vmul.f32 %v1373, %v1538
    %v1598 = vmul.f32 %v1374, %v1540
    %v1599 = vmul.f32 %v1375, %v1542
    %v1600 = vmul.f32 %v1376, %v1544
    %v1601 = vmul.f32 %v1377, %v1546
    %v1602 = vmul.f32 %v1378, %v1548
    %v1603 = vmul.f32 %v1379, %v1550
    %v1604 = vmul.f32 %v1380, %v1552
    %v1605 = vmul.f32 %v1381, %v1554
    %v1606 = vmul.f32 %v1382, %v1556
    %v1607 = vmul.f32 %v1383, %v1558
    %v1608 = vmul.f32 %v1384, %v1560
    %v1609 = vmul.f32 %v1385, %v1562
    %v1610 = vmul.f32 %v1386, %v1564
    %v1611 = vmul.f32 %v1387, %v1566
    %v1612 = vmul.f32 %v1388, %v1568
    %v1613 = vmul.f32 %v1389, %v1570
    %v1614 = vmul.f32 %v1390, %v1572
    %v1615 = vmul.f32 %v1391, %v1574
    %v1616 = vmul.f32 %v1392, %v1576
    %v1617 = vmul.f32 %v1393, %v1578
    %v1618 = vmul.f32 %v1394, %v1580
    %v1619 = vmul.f32 %v1395, %v1582
    %v1620 = vmul.f32 %v1396, %v1584
    %v1621 = vmul.f32 %v1397, %v1586
    %v1622 = vmul.f32 %v1398, %v1588
    %v1623 = vmul.f32 %v1399, %v1590
    %v1624 = vmul.f32 %v1400, %v1592
    %v1625 = vld [vmem:[%s3] sm:$0x1]
    %v1626 = vpack.c.bf16 %v1595, %v1593
    %v1627 = vpack.c.bf16 %v1596, %v1594
    %v1628 = vpack.c.bf16 %v1599, %v1597
    %v1629 = vpack.c.bf16 %v1600, %v1598
    %v1630 = vpack.c.bf16 %v1603, %v1601
    %v1631 = vpack.c.bf16 %v1604, %v1602
    %v1632 = vpack.c.bf16 %v1607, %v1605
    %v1633 = vpack.c.bf16 %v1608, %v1606
    %v1634 = vpack.c.bf16 %v1611, %v1609
    %v1635 = vpack.c.bf16 %v1612, %v1610
    %v1636 = vpack.c.bf16 %v1615, %v1613
    %v1637 = vpack.c.bf16 %v1616, %v1614
    %v1638 = vpack.c.bf16 %v1619, %v1617
    %v1639 = vpack.c.bf16 %v1620, %v1618
    %v1640 = vpack.c.bf16 %v1623, %v1621
    %v1641 = vpack.c.bf16 %v1624, %v1622
    %s1642 = sld [smem:[#allocation2]]
    %v1643 = vstv %s1642
    %1644 = vmatprep.subr.bf16.mxu0 %v1627
    %1645 = vmatpush1.bf16.msra.mxu0 %v1626
    %1646 = vmatprep.subr.bf16.mxu0 %v1629
    %1647 = vmatpush1.bf16.msra.mxu0 %v1628
    %1648 = vmatprep.subr.bf16.mxu0 %v1631
    %1649 = vmatpush1.bf16.msra.mxu0 %v1630
    %1650 = vmatprep.subr.bf16.mxu0 %v1633
    %1651 = vmatpush1.bf16.msra.mxu0 %v1632
    %1652 = vmatprep.subr.bf16.mxu0 %v1635
    %1653 = vmatpush1.bf16.msra.mxu0 %v1634
    %1654 = vmatprep.subr.bf16.mxu0 %v1637
    %1655 = vmatpush1.bf16.msra.mxu0 %v1636
    %1656 = vmatprep.subr.bf16.mxu0 %v1639
    %1657 = vmatpush1.bf16.msra.mxu0 %v1638
    %1658 = vmatprep.subr.bf16.mxu0 %v1641
    %1659 = vmatpush1.bf16.msra.mxu0 %v1640
    %1660 = vmatprep.subr.bf16.mxu0 0
    %1661 = vmatpush1.bf16.msra.mxu0 0
    %1662 = vmatprep.subr.bf16.mxu0 0
    %1663 = vmatpush1.bf16.msra.mxu0 0
    %1664 = vmatprep.subr.bf16.mxu0 0
    %1665 = vmatpush1.bf16.msra.mxu0 0
    %1666 = vmatprep.subr.bf16.mxu0 0
    %1667 = vmatpush1.bf16.msra.mxu0 0
    %1668 = vmatprep.subr.bf16.mxu0 0
    %1669 = vmatpush1.bf16.msra.mxu0 0
    %1670 = vmatprep.subr.bf16.mxu0 0
    %1671 = vmatpush1.bf16.msra.mxu0 0
    %1672 = vmatprep.subr.bf16.mxu0 0
    %1673 = vmatpush1.bf16.msra.mxu0 0
    %1674 = vmatprep.subr.bf16.mxu0 0
    %1675 = vmatpush1.bf16.msra.mxu0 0
    %1676 = vmatprep.mubr.bf16.mxu0 0
    %1677 = vmatmul.mubr.bf16.gmra.mrb[0].mxu0 %v1625
    %v1678 = vpop.f32.mrb[0].mxu0
    %v1679 = vadd.f32 %v1643, %v1678
    %v1680 = vpop.f32.mrb[0].mxu0
    %v1681 = vadd.f32 %v1643, %v1680
    %v1682 = vpop.f32.mrb[0].mxu0
    %v1683 = vpop.f32.mrb[0].mxu0
    %1684 = vdwg.mxu0
    %v1687 = vcombine.low %v1679, %v1681
    %v1689 = vunpack.c.l.s4 1966171168
    %v1690 = vunpack.c.0.s8 %v1689
    %v1691 = vlaneseq
    %v1692 = vshrl.u32 %v1691, 7
    %v1693 = vsub.s32 %v1690, %v1692
    %v1694 = vrot.slane %v1687, %v1693
    %v1696 = vunpack.c.l.s4 1966171168
    %v1697 = vunpack.c.0.s8 %v1696
    %v1698 = vlaneseq
    %v1699 = vshrl.u32 %v1698, 7
    %v1700 = vsub.s32 %v1697, %v1699
    %v1701 = vrot.slane %v1694, %v1700
    %v1703 = vlaneseq
    %vm1704 = vcmp.ge.s32.totalorder %v1703, 0
    %vm1705 = vcmp.lt.s32.totalorder %v1703, 256
    %vm1706 = vmand %vm1704, %vm1705
    %1707 = vst.msk [vmem:[#allocation3] sm:$0x3] %vm1706, %v1701
    // Predicated region
    $region22: #{attention_gated_forward.1} parent=1 // pred_check
      _
    $region23: #{attention_gated_forward.1} parent=1 // pred_check_branch
      %1709 = sbr.rel (0) target = $region25
    $region24: #{attention_gated_forward.1} parent=1 // pred_region
      %s1711 = ssub.s32 32, 32
      %1712 = vsyncadd [#allocation4], %s1711
      %s1714 = sshll.u32 [#allocation3], 4
      %s1715 = int_to_ptr.vmem [resolvable:$true] %s1714
      %1717 = dma.vmem_to_hbm [thread:$0]  %s1715, 32, %s5, [#allocation4]
    $region25: #{attention_gated_forward.1} parent=1 // pred_fallthru
      _
    // Predicated region
    $region26: #{attention_gated_forward.1} parent=1 // pred_check
      _
    $region27: #{attention_gated_forward.1} parent=1 // pred_check_branch
      %1719 = sbr.rel (0) target = $region29
    $region28: #{attention_gated_forward.1} parent=1 // pred_region
      %1720 = dma.done [#allocation4], 32
    $region29: #{attention_gated_forward.1} parent=1 // pred_fallthru
      _
    %1721 = vsyncpa [#allocation4], 1

</llo_original>
